<compile_context>
chip_gen: v7x
topology: tpu7x:2x2x1
jax: 0.10.0
libtpu: 0.0.40
codegen_flags: <defaults>
</compile_context>

<pallas_src>
import jax
import jax.numpy as jnp
from jax.experimental import pallas as pl
from jax.experimental.pallas import tpu as pltpu


def _round_up(x, m):
    return (x + m - 1) // m * m


def _cdiv(a, b):
    return -(-a // b)


def _epilogue(acc, out_dtype, apply_sigmoid):
    """sigmoid(x) = 0.5 * tanh(0.5 * x) + 0.5 : a single EUP op (tanh)
    instead of exp + divide, so the epilogue stays below the HBM store time
    even on v7x.  When the output is bf16 the tanh runs in bf16 (native bf16
    EUP on v6e/v7x; Mosaic upcasts on v5e, which is store-bound anyway)."""
    if not apply_sigmoid:
        return acc.astype(out_dtype)
    if jnp.dtype(out_dtype) == jnp.dtype(jnp.bfloat16):
        h = (acc * 0.5).astype(jnp.bfloat16)
        return jnp.tanh(h) * 0.5 + 0.5
    return (jnp.tanh(acc * 0.5) * 0.5 + 0.5).astype(out_dtype)


def _make_kernel(tn, resident_rhs, out_dtype, apply_sigmoid):
    """Per-tile kernel body.

    resident_rhs=True : zt_ref holds the whole (D, rhs_cols) transposed z
                        (column-padded, DMA'd once); slice the j-th lane block
                        out of VMEM.
    resident_rhs=False: zt_ref is the streamed (D, tn) block for column
                        block j.
    """
    if resident_rhs:

        def kernel(zl_ref, zt_ref, o_ref):
            j = pl.program_id(1)
            start = pl.multiple_of(j * tn, tn)
            acc = jax.lax.dot_general(
                zl_ref[...], zt_ref[:, pl.ds(start, tn)],
                dimension_numbers=(((1,), (0,)), ((), ())),  # (tm,D)x(D,tn)
                preferred_element_type=jnp.float32,
            )
            o_ref[...] = _epilogue(acc, out_dtype, apply_sigmoid)

    else:

        def kernel(zl_ref, zt_ref, o_ref):
            acc = jax.lax.dot_general(
                zl_ref[...], zt_ref[...],
                dimension_numbers=(((1,), (0,)), ((), ())),  # (tm,D)x(D,tn)
                preferred_element_type=jnp.float32,
            )
            o_ref[...] = _epilogue(acc, out_dtype, apply_sigmoid)

    return kernel


def inner_product_decoder(z, *, tm=512, tn=2048,
                          out_dtype=jnp.bfloat16,
                          compute_dtype=jnp.bfloat16,
                          act="sigmoid",
                          resident_rhs=None):
    """adj = act(z @ z.T); dropout is identity (eval mode).

    tm / tn       : output tile (rows / lanes); tn is the lane-dense axis.
    out_dtype     : output dtype.  Default bf16 (halves HBM write traffic;
                    ~0.4% relative error on probabilities).  Pass jnp.float32
                    for full precision.
    compute_dtype : dtype of the MXU operands (accumulation is always f32).
                    Default bf16; pass jnp.float32 or None to keep z's dtype.
    act           : "sigmoid" (standalone InnerProductDecoder default) or
                    "identity" (what SEDR passes to its `dc`).
    resident_rhs  : force / forbid keeping z.T fully resident in VMEM.
                    Default: auto, based on VMEM capacity.
    """
    N, D = z.shape
    out_dtype = jnp.dtype(out_dtype)
    if compute_dtype is not None:
        z = z.astype(compute_dtype)
    in_dtype = z.dtype
    in_bytes = jnp.dtype(in_dtype).itemsize
    out_bytes = out_dtype.itemsize
    apply_sigmoid = {"sigmoid": True, "identity": False}[act]

    # ---- tile sizes: tm multiple of 8 (sublane), tn multiple of 128 (lane).
    tm_eff = max(8, min(tm, _round_up(N, 8)))
    tn_eff = max(128, min(tn, _round_up(N, 128)))
    gm, gn = _cdiv(N, tm_eff), _cdiv(N, tn_eff)
    # v7x shards "parallel" grid axes across 2 TensorCores: for mid-sized N
    # make sure at least one axis has >= 2 blocks (costs nothing on v5e/v6e).
    if gm == 1 and gn == 1 and N > 8:
        half = _round_up(_cdiv(N, 2), 8)
        if half < N:
            tm_eff = half
            gm = _cdiv(N, tm_eff)

    # ---- resident vs streamed RHS (threshold scales with VMEM capacity).
    try:
        vmem_cap = int(pltpu.get_tpu_info().vmem_capacity_bytes)
    except Exception:
        vmem_cap = 64 << 20  # conservative (v7x-sized) fallback
    if resident_rhs is None:
        resident_rhs = (_round_up(N, tn_eff) * D * in_bytes
                        <= max(4 << 20, vmem_cap // 12))

    # RHS pre-transposed to (D, N): lane-dense, natural NN MXU orientation.
    zt = z.T
    if resident_rhs:
        # Column-pad (cheap, D x N) so the in-kernel lane slice for the last
        # column block never reads out of bounds (VMEM OOB is unchecked).
        rhs_cols = _round_up(N, tn_eff)
        if rhs_cols != N:
            zt = jnp.pad(zt, ((0, 0), (0, rhs_cols - N)))
        rhs_spec = pl.BlockSpec((D, rhs_cols), lambda i, j: (0, 0))  # once
    else:
        rhs_cols = tn_eff
        rhs_spec = pl.BlockSpec((D, tn_eff), lambda i, j: (0, j))

    lhs_spec = pl.BlockSpec((tm_eff, D), lambda i, j: (i, 0))
    out_spec = pl.BlockSpec((tm_eff, tn_eff), lambda i, j: (i, j))

    # Double-buffered tiles + the internal f32 matmul/epilogue temporary.
    vmem_limit = int(2 * tm_eff * tn_eff * out_bytes
                     + 2 * tm_eff * D * in_bytes
                     + 2 * rhs_cols * D * in_bytes
                     + 2 * tm_eff * tn_eff * 4
                     + (4 << 20))
    vmem_limit = max(vmem_limit, 16 << 20)

    cost = pl.CostEstimate(
        flops=2 * N * N * D,
        transcendentals=(N * N) if apply_sigmoid else 0,
        bytes_accessed=N * N * out_bytes + (gm + 1) * N * D * in_bytes,
    )

    return pl.pallas_call(
        _make_kernel(tn_eff, resident_rhs, out_dtype, apply_sigmoid),
        out_shape=jax.ShapeDtypeStruct((N, N), out_dtype),
        grid_spec=pltpu.PrefetchScalarGridSpec(
            num_scalar_prefetch=0,
            grid=(gm, gn),
            in_specs=[lhs_spec, rhs_spec],
            out_specs=out_spec,
        ),
        compiler_params=pltpu.CompilerParams(
            dimension_semantics=("parallel", "parallel"),
            vmem_limit_bytes=vmem_limit,
        ),
        cost_estimate=cost,
    )(z, zt)


if __name__ == "__main__":
    key = jax.random.PRNGKey(0)

    # SEDR-like shapes: N spots, latent_dim = gcn_hidden2 + feat_hidden2 = 32.
    # --- Test 1: default path (bf16 MXU operands + bf16 output, resident RHS,
    #             non-tile-aligned N -> masked boundary stores, split row grid).
    N1, D1 = 200, 32
    z1 = jax.random.normal(key, (N1, D1), dtype=jnp.float32)
    adj1 = jax.block_until_ready(inner_product_decoder(z1))
    z1b = z1.astype(jnp.bfloat16).astype(jnp.float32)
    ref1 = jax.nn.sigmoid(
        jnp.dot(z1b, z1b.T, precision=jax.lax.Precision.HIGHEST))
    assert adj1.shape == (N1, N1) and adj1.dtype == jnp.bfloat16
    assert jnp.allclose(adj1.astype(jnp.float32), ref1, atol=2e-2, rtol=2e-2)

    # --- Test 2: full-precision opt-in path, streamed RHS, multi-block grid
    #             on both axes.
    N2, D2 = 384, 32
    z2 = jax.random.normal(jax.random.PRNGKey(0), (N2, D2), dtype=jnp.float32)
    adj2 = jax.block_until_ready(
        inner_product_decoder(z2, tm=128, tn=128,
                              compute_dtype=jnp.float32,
                              out_dtype=jnp.float32,
                              resident_rhs=False))
    ref2 = jax.nn.sigmoid(
        jnp.dot(z2, z2.T, precision=jax.lax.Precision.HIGHEST))
    assert adj2.shape == (N2, N2) and adj2.dtype == jnp.float32
    assert jnp.allclose(adj2, ref2, atol=1e-4, rtol=1e-4)

    # --- Test 3: identity activation (how SEDR constructs its decoder).
    adj3 = jax.block_until_ready(
        inner_product_decoder(z1, act="identity",
                              compute_dtype=jnp.float32,
                              out_dtype=jnp.float32))
    ref3 = jnp.dot(z1, z1.T, precision=jax.lax.Precision.HIGHEST)
    assert adj3.shape == (N1, N1)
    assert jnp.allclose(adj3, ref3, atol=1e-2, rtol=1e-2)

    print("KERNEL_OK")
</pallas_src>

<mosaic_0001>
module attributes {stable_mosaic.version = 11 : i64} {
  func.func @kernel(%arg0: i32, %arg1: i32, %arg2: memref<104x32xbf16, #tpu.memory_space<vmem>>, %arg3: memref<32x256xbf16, #tpu.memory_space<vmem>>, %arg4: memref<104x256xbf16, #tpu.memory_space<vmem>>) attributes {dimension_semantics = [#tpu.dimension_semantics<parallel>, #tpu.dimension_semantics<parallel>], iteration_bounds = array<i64: 2, 1>, scalar_prefetch = 0 : i64, scratch_operands = 0 : i64, tpu.core_type = #tpu.core_type<tc>, window_params = [{transform_indices = @transform_0, window_bounds = array<i64: 104, 32>}, {pipeline_mode = #tpu.pipeline_mode<synchronous>, transform_indices = @transform_1, window_bounds = array<i64: 32, 256>}, {transform_indices = @transform_2, window_bounds = array<i64: 104, 256>}]} {
    %c256_i32 = arith.constant 256 : i32
    %0 = arith.muli %arg1, %c256_i32 : i32
    %1 = tpu.assume_multiple %0, 256 : i32
    %c0 = arith.constant 0 : index
    %c0_0 = arith.constant 0 : index
    %2 = vector.load %arg2[%c0, %c0_0] : memref<104x32xbf16, #tpu.memory_space<vmem>>, vector<104x32xbf16>
    %c0_1 = arith.constant 0 : index
    %3 = arith.index_cast %1 : i32 to index
    %4 = vector.load %arg3[%c0_1, %3] : memref<32x256xbf16, #tpu.memory_space<vmem>>, vector<32x256xbf16>
    %cst = arith.constant dense<0.000000e+00> : vector<104x256xf32>
    %5 = tpu.matmul %2, %4, %cst {dimension_numbers = #tpu.dot_dimension_numbers<[1], [0], [0], [1], [0, 0, 1, 1], [], []>} : vector<104x32xbf16>, vector<32x256xbf16>, vector<104x256xf32> -> vector<104x256xf32>
    %cst_2 = arith.constant 5.000000e-01 : f32
    %6 = vector.broadcast %cst_2 : f32 to vector<104x256xf32>
    %7 = arith.mulf %5, %6 : vector<104x256xf32>
    %8 = arith.truncf %7 : vector<104x256xf32> to vector<104x256xbf16>
    %9 = math.tanh %8 : vector<104x256xbf16>
    %cst_3 = arith.constant 5.000000e-01 : bf16
    %10 = vector.broadcast %cst_3 : bf16 to vector<104x256xbf16>
    %11 = arith.mulf %9, %10 : vector<104x256xbf16>
    %cst_4 = arith.constant 5.000000e-01 : bf16
    %12 = vector.broadcast %cst_4 : bf16 to vector<104x256xbf16>
    %13 = arith.addf %11, %12 : vector<104x256xbf16>
    %c0_5 = arith.constant 0 : index
    %c0_6 = arith.constant 0 : index
    %14 = vector.load %arg4[%c0_5, %c0_6] : memref<104x256xbf16, #tpu.memory_space<vmem>>, vector<104x256xbf16>
    tpu.vector_store %arg4[%c0_5, %c0_6], %13 {strides = array<i32>} : memref<104x256xbf16, #tpu.memory_space<vmem>>, vector<104x256xbf16>,
    return
  }
  func.func @transform_0(%arg0: i32, %arg1: i32) -> (i32, i32) {
    %c0_i32 = arith.constant 0 : i32
    %c0_i32_0 = arith.constant 0 : i32
    return %arg0, %c0_i32 : i32, i32
  }
  func.func @transform_1(%arg0: i32, %arg1: i32) -> (i32, i32) {
    %c0_i32 = arith.constant 0 : i32
    %c0_i32_0 = arith.constant 0 : i32
    %c0_i32_1 = arith.constant 0 : i32
    return %c0_i32, %c0_i32_0 : i32, i32
  }
  func.func @transform_2(%arg0: i32, %arg1: i32) -> (i32, i32) {
    %c0_i32 = arith.constant 0 : i32
    return %arg0, %arg1 : i32, i32
  }
}

</mosaic_0001>

<llo_original>
// kernel: tpu_custom_call.1
$region0: #{tpu_custom_call.1}
  #allocation0 [shape = 'u32[]', space=smem, size = 0x4, offset = 0x4, fixed_abs, tag = 'smem constant byte address 0x4 - core index']
  #allocation1 [shape = 'u32[144,128]{1,0:T(1,128)}', space=vmem, size = 0x12000, scoped, tag = 'internal scratch']
  %s0 = inlined_call_operand.vmem [shape: bf16[200,32], index: 0, kind: input, shape index: {}]
  %s1 = inlined_call_operand.vmem [shape: bf16[32,256], index: 1, kind: input, shape index: {}]
  %s2 = inlined_call_operand.hbm [shape: bf16[200,200], index: 2, kind: output, shape index: {}]
  %s3 = sld [smem:[#allocation0]]
  $region41: #{tpu_custom_call.1} parent=0
    _
  %s5 = ssub.s32 1, %s3
  %s6 = scalar_select 0, %s5, %s3
  $region1: #{tpu_custom_call.1} parent=0
    #allocation2 [shape = 'u8[106496]{0}', space=vmem, size = 0x1a000, scoped, tag = 'output window, operand 0']
    #allocation3 [shape = 's32[2]{0}', space=sflag, size = 0x8, scoped, tag = 'scoped memory for tpu_custom_call.1']
    %7 = vsyncpa [#allocation3], 0
    %s8 = scalar_lea.sflag [#allocation3], 1
    %9 = vsyncpa %s8, 0
    loop: start=0, step=1, limit=4
    $region2: #{tpu_custom_call.1} parent=1 // loop_pre_header
      _
    $region3: #{tpu_custom_call.1} parent=1 // loop_header
      %s11 = sphi 0, %s15
      %p12 = scmp.ge.s32.totalorder %s11, 4
      %s18 = sphi 0, %s30
      %s19 = sphi 0, %s26
      %s20 = sphi 0, %s18
      %s21 = sphi 0, %s19
      %s22 = sphi 0, %s20
      %s23 = sphi 0, %s21
      %s33 = sphi 0, %s35
      %s36 = sphi 0, %s33
      %s37 = sphi 0, %s36
      %s53 = sphi 0, %s37
      %s57 = sphi 0, %s57
      %s59 = sphi 0, %s57
      %s60 = sphi 0, %s59
      %s74 = sphi 0, %s60
      %s82 = sphi 0, %s84
      %s85 = sphi 0, %s82
      %s86 = sphi 0, %s85
      %s102 = sphi 0, %s86
    $region4: #{tpu_custom_call.1} parent=1 // loop_header_branch
      %14 = sbr.rel (%p12) target = $region8
    $region5: #{tpu_custom_call.1} parent=1 // loop_body
      %s16 = ssub.s32 %s11, 1
      %s17 = ssub.s32 %s11, 2
      %s24 = sadd.s32 1, %s19
      %p25 = scmp.ge.s32.totalorder %s24, 1
      %s26 = scalar_select %p25, 0, %s24
      %s27 = sadd.s32 1, %s18
      %s28 = scalar_select %p25, %s27, %s18
      %p29 = scmp.ge.s32.totalorder %s28, 2
      %s30 = scalar_select %p29, 0, %s28
      %s31 = ssub.s32 %s18, %s30
      %p32 = scmp.eq.s32.totalorder %s31, 0
      %s34 = sadd.s32 %s33, 1
      %s35 = scalar_select %p32, %s33, %s34
      %p38 = pneg %p32
      %p39 = scmp.eq.s32.totalorder %s11, 1
      %p40 = por %p38, %p39
      %p41 = scmp.ne.s32.totalorder %s33, %s36
      %p42 = scmp.eq.s32.totalorder %s11, 0
      %p43 = por %p41, %p42
      %p44 = scmp.ne.s32.totalorder %s33, %s36
      %p45 = scmp.eq.s32.totalorder %s16, 1
      %p46 = por %p44, %p45
      %p47 = scmp.ne.s32.totalorder %s36, %s37
      %p48 = scmp.eq.s32.totalorder %s16, 0
      %p49 = por %p47, %p48
      %p50 = scmp.ne.s32.totalorder %s36, %s37
      %p51 = scmp.eq.s32.totalorder %s17, 1
      %p52 = por %p50, %p51
      %p54 = scmp.ne.s32.totalorder %s37, %s53
      %p55 = scmp.eq.s32.totalorder %s17, 0
      %p56 = por %p54, %p55
      %s58 = sadd.s32 %s57, 1
      %p61 = scmp.eq.s32.totalorder %s11, 1
      %p62 = scmp.ne.s32.totalorder %s57, %s59
      %p63 = scmp.eq.s32.totalorder %s11, 0
      %p64 = por %p62, %p63
      %p65 = scmp.ne.s32.totalorder %s57, %s59
      %p66 = scmp.eq.s32.totalorder %s16, 1
      %p67 = por %p65, %p66
      %p68 = scmp.ne.s32.totalorder %s59, %s60
      %p69 = scmp.eq.s32.totalorder %s16, 0
      %p70 = por %p68, %p69
      %p71 = scmp.ne.s32.totalorder %s59, %s60
      %p72 = scmp.eq.s32.totalorder %s17, 1
      %p73 = por %p71, %p72
      %p75 = scmp.ne.s32.totalorder %s60, %s74
      %p76 = scmp.eq.s32.totalorder %s17, 0
      %p77 = por %p75, %p76
      %s78 = ssub.s32 %s18, %s30
      %s79 = ssub.s32 %s19, %s26
      %s80 = sor.u32 %s78, %s79
      %p81 = scmp.eq.s32.totalorder %s80, 0
      %s83 = sadd.s32 %s82, 1
      %s84 = scalar_select %p81, %s82, %s83
      %p87 = pneg %p81
      %p88 = scmp.eq.s32.totalorder %s11, 1
      %p89 = por %p87, %p88
      %p90 = scmp.ne.s32.totalorder %s82, %s85
      %p91 = scmp.eq.s32.totalorder %s11, 0
      %p92 = por %p90, %p91
      %p93 = scmp.ne.s32.totalorder %s82, %s85
      %p94 = scmp.eq.s32.totalorder %s16, 1
      %p95 = por %p93, %p94
      %p96 = scmp.ne.s32.totalorder %s85, %s86
      %p97 = scmp.eq.s32.totalorder %s16, 0
      %p98 = por %p96, %p97
      %p99 = scmp.ne.s32.totalorder %s85, %s86
      %p100 = scmp.eq.s32.totalorder %s17, 1
      %p101 = por %p99, %p100
      %p103 = scmp.ne.s32.totalorder %s86, %s102
      %p104 = scmp.eq.s32.totalorder %s17, 0
      %p105 = por %p103, %p104
      %p106 = scmp.le.s32.totalorder 1, %s11
      %p107 = scmp.lt.s32.totalorder %s11, 3
      %p108 = pnand %p106, %p107
      %p109 = pneg %p108
      // Predicated region
      $region9: #{tpu_custom_call.1} parent=5 // pred_check
        _
      $region10: #{tpu_custom_call.1} parent=5 // pred_check_branch
        %111 = sbr.rel (%p108) target = $region12
      $region11: #{tpu_custom_call.1} parent=5 // pred_region
        %s112 = ssub.s32 %s11, 1
        // Predicated region
        $region13: #{tpu_custom_call.1} parent=11 // pred_check
          %p113 = pneg %p70
        $region14: #{tpu_custom_call.1} parent=11 // pred_check_branch
          %115 = sbr.rel (%p113) target = $region16
        $region15: #{tpu_custom_call.1} parent=11 // pred_region
          _
        $region16: #{tpu_custom_call.1} parent=11 // pred_fallthru
          _
      $region12: #{tpu_custom_call.1} parent=5 // pred_fallthru
        _
      %p116 = scmp.lt.s32.totalorder %s11, 2
      // Predicated region
      $region17: #{tpu_custom_call.1} parent=5 // pred_check
        %p117 = pneg %p116
      $region18: #{tpu_custom_call.1} parent=5 // pred_check_branch
        %119 = sbr.rel (%p117) target = $region20
      $region19: #{tpu_custom_call.1} parent=5 // pred_region
        // Predicated region
        $region21: #{tpu_custom_call.1} parent=19 // pred_check
          %p120 = pneg %p43
        $region22: #{tpu_custom_call.1} parent=19 // pred_check_branch
          %122 = sbr.rel (%p120) target = $region24
        $region23: #{tpu_custom_call.1} parent=19 // pred_region
          %s123 = smul.u32 13, %s18
          %s124 = ssub.s32 25, %s123
          %p125 = scmp.lt.s32.totalorder %s124, 13
          %s126 = scalar_select %p125, %s124, 13
          %s127 = smul.u32 64, %s126
          %p128 = scmp.lt.s32.totalorder %s123, 24
          %s129 = scalar_select %p128, %s123, 24
          %s130 = smul.addr %s129, 4
          %s131 = scalar_lea.vmem %s0, %s130
          %s132 = smul.u32 13, %s18
          %s133 = ssub.s32 25, %s132
          %p134 = scmp.lt.s32.totalorder %s133, 13
          %s135 = scalar_select %p134, %s133, 13
          %s136 = smul.u32 64, %s135
        $region24: #{tpu_custom_call.1} parent=19 // pred_fallthru
          _
      $region20: #{tpu_custom_call.1} parent=5 // pred_fallthru
        _
      %p137 = scmp.le.s32.totalorder 1, %s11
      %p138 = scmp.lt.s32.totalorder %s11, 3
      %p139 = pnand %p137, %p138
      %p140 = pneg %p139
      // Predicated region
      $region25: #{tpu_custom_call.1} parent=5 // pred_check
        _
      $region26: #{tpu_custom_call.1} parent=5 // pred_check_branch
        %142 = sbr.rel (%p139) target = $region28
      $region27: #{tpu_custom_call.1} parent=5 // pred_region
        %s143 = ssub.s32 %s11, 1
        %s144 = smul.u32 13, %s20
        %s145 = ssub.s32 25, %s144
        %p146 = scmp.lt.s32.totalorder %s145, 13
        %s147 = scalar_select %p146, %s145, 13
        %s148 = smul.u32 64, %s147
        %p149 = scmp.lt.s32.totalorder %s144, 24
        %s150 = scalar_select %p149, %s144, 24
        %s151 = smul.addr %s150, 4
        %s152 = scalar_lea.vmem %s0, %s151
        %p153 = pneg %p49
        %p154 = pneg %p46
        %p155 = pneg %p70
        %p156 = pneg %p67
        %p157 = pneg %p98
        %p158 = pneg %p95
        %s159 = sand.u32 %s85, 1
        %s160 = scalar_lea.sflag [#allocation3], %s159
        %s161 = sand.u32 %s85, 1
        %s162 = smul.addr %s161, 104
        %s163 = scalar_lea.vmem [#allocation2], %s162
        %s164 = smul.u32 13, %s20
        %s165 = ssub.s32 25, %s164
        %p166 = scmp.lt.s32.totalorder %s165, 13
        %s167 = scalar_select %p166, %s165, 13
        %s168 = smul.u32 64, %s167
        %p169 = scmp.lt.s32.totalorder %s164, 24
        %s170 = scalar_select %p169, %s164, 24
        %s171 = smul.addr %s170, 4
        %s172 = scalar_lea.vmem %s0, %s171
        %s173 = smul.u32 13, %s20
        %s174 = ssub.s32 25, %s173
        %p175 = scmp.lt.s32.totalorder %s174, 13
        %s176 = scalar_select %p175, %s174, 13
        %s177 = smul.u32 64, %s176
        %s178 = smul.u32 13, %s20
        %s179 = smul.u32 2, %s21
        %s180 = ssub.s32 25, %s178
        %p181 = scmp.lt.s32.totalorder %s180, 13
        %s182 = scalar_select %p181, %s180, 13
        %s183 = smul.u32 64, %s182
        %s184 = smul.u32 %s183, 2
        %s187 = smul.u32 %s21, 256
        %v188 = vld [vmem:[%s172] sm:$0xf]
        %v189 = vld [vmem:[%s172 + $0x4] sm:$0xf]
        %v190 = vld [vmem:[%s172 + $0x8] sm:$0xf]
        %v191 = vld [vmem:[%s172 + $0xc] sm:$0xf]
        %v192 = vld [vmem:[%s172 + $0x10] sm:$0xf]
        %v193 = vld [vmem:[%s172 + $0x14] sm:$0xf]
        %v194 = vld [vmem:[%s172 + $0x18] sm:$0xf]
        %v195 = vld [vmem:[%s172 + $0x1c] sm:$0xf]
        %v196 = vld [vmem:[%s172 + $0x20] sm:$0xf]
        %v197 = vld [vmem:[%s172 + $0x24] sm:$0xf]
        %v198 = vld [vmem:[%s172 + $0x28] sm:$0xf]
        %v199 = vld [vmem:[%s172 + $0x2c] sm:$0xf]
        %v200 = vld [vmem:[%s172 + $0x30] sm:$0xf]
        %s201 = sshra.s32 %s187, 7
        %s202 = sand.u32 %s187, 127
        %s203 = smul.addr %s201, 4
        %s204 = scalar_lea.vmem %s1, %s203
        %v205 = vld [vmem:[%s204] sm:$0xff]
        %v206 = vld [vmem:[%s204 + $0x8] sm:$0xff]
        %v207 = vld [vmem:[%s204 + $0x10] sm:$0xff]
        %v208 = vld [vmem:[%s204 + $0x18] sm:$0xff]
        %v222 = vunpack.c.l.b16 %v188
        %v223 = vunpack.c.l.b16 %v189
        %v224 = vunpack.c.l.b16 %v190
        %v225 = vunpack.c.l.b16 %v191
        %v226 = vunpack.c.l.b16 %v192
        %v227 = vunpack.c.l.b16 %v193
        %v228 = vunpack.c.l.b16 %v194
        %v229 = vunpack.c.l.b16 %v195
        %v230 = vunpack.c.l.b16 %v196
        %v231 = vunpack.c.l.b16 %v197
        %v232 = vunpack.c.l.b16 %v198
        %v233 = vunpack.c.l.b16 %v199
        %v234 = vunpack.c.l.b16 %v200
        %v235 = vpack.c.b16 %v223, %v222
        %v236 = vpack.c.b16 %v225, %v224
        %v237 = vpack.c.b16 %v227, %v226
        %v238 = vpack.c.b16 %v229, %v228
        %v239 = vpack.c.b16 %v231, %v230
        %v240 = vpack.c.b16 %v233, %v232
        %v241 = vpack.c.b16 %v234, %v234
        %v246 = vunpack.c.l.b16 %v205
        %v247 = vunpack.c.h.b16 %v205
        %v248 = vunpack.c.l.b16 %v206
        %v249 = vunpack.c.h.b16 %v206
        %v250 = vunpack.c.l.b16 %v207
        %v251 = vunpack.c.h.b16 %v207
        %v252 = vunpack.c.l.b16 %v208
        %v253 = vunpack.c.h.b16 %v208
        %v254 = vpack.c.b16 %v248, %v246
        %v255 = vpack.c.b16 %v249, %v247
        %v256 = vpack.c.b16 %v252, %v250
        %v257 = vpack.c.b16 %v253, %v251
        %vm262 = vcmask 261120
        %v264 = vsel %vm262, %v235, 0
        %v267 = vsel %vm262, %v236, 0
        %v270 = vsel %vm262, %v237, 0
        %v273 = vsel %vm262, %v238, 0
        %v276 = vsel %vm262, %v239, 0
        %v279 = vsel %vm262, %v240, 0
        %v282 = vsel %vm262, %v241, 0
        %284 = vmatprep.subr.bf16.mxu0 %v255
        %285 = vmatpush1.bf16.msra.mxu0 %v254
        %286 = vmatprep.subr.bf16.mxu0 %v257
        %287 = vmatpush1.bf16.msra.mxu0 %v256
        %288 = vmatprep.subr.bf16.mxu0 0
        %289 = vmatpush1.bf16.msra.mxu0 0
        %290 = vmatprep.subr.bf16.mxu0 0
        %291 = vmatpush1.bf16.msra.mxu0 0
        %292 = vmatprep.subr.bf16.mxu0 0
        %293 = vmatpush1.bf16.msra.mxu0 0
        %294 = vmatprep.subr.bf16.mxu0 0
        %295 = vmatpush1.bf16.msra.mxu0 0
        %296 = vmatprep.subr.bf16.mxu0 0
        %297 = vmatpush1.bf16.msra.mxu0 0
        %298 = vmatprep.subr.bf16.mxu0 0
        %299 = vmatpush1.bf16.msra.mxu0 0
        %300 = vmatprep.subr.bf16.mxu0 0
        %301 = vmatpush1.bf16.msra.mxu0 0
        %302 = vmatprep.subr.bf16.mxu0 0
        %303 = vmatpush1.bf16.msra.mxu0 0
        %304 = vmatprep.subr.bf16.mxu0 0
        %305 = vmatpush1.bf16.msra.mxu0 0
        %306 = vmatprep.subr.bf16.mxu0 0
        %307 = vmatpush1.bf16.msra.mxu0 0
        %308 = vmatprep.subr.bf16.mxu0 0
        %309 = vmatpush1.bf16.msra.mxu0 0
        %310 = vmatprep.subr.bf16.mxu0 0
        %311 = vmatpush1.bf16.msra.mxu0 0
        %312 = vmatprep.subr.bf16.mxu0 0
        %313 = vmatpush1.bf16.msra.mxu0 0
        %314 = vmatprep.subr.bf16.mxu0 0
        %315 = vmatpush1.bf16.msra.mxu0 0
        %316 = vmatprep.mubr.bf16.mxu0 0
        %317 = vmatmul.mubr.bf16.gmra.mrb[0].mxu0 %v264
        %v318 = vpop.f32.mrb[0].mxu0
        %v319 = vadd.f32 0.0, %v318
        %v320 = vpop.f32.mrb[0].mxu0
        %v321 = vadd.f32 0.0, %v320
        %v322 = vpop.f32.mrb[0].mxu0
        %v323 = vadd.f32 0.0, %v322
        %v324 = vpop.f32.mrb[0].mxu0
        %v325 = vadd.f32 0.0, %v324
        %326 = vmatprep.mubr.bf16.mxu0 0
        %327 = vmatmul.mubr.bf16.gmra.mrb[0].mxu0 %v267
        %v328 = vpop.f32.mrb[0].mxu0
        %v329 = vadd.f32 0.0, %v328
        %v330 = vpop.f32.mrb[0].mxu0
        %v331 = vadd.f32 0.0, %v330
        %v332 = vpop.f32.mrb[0].mxu0
        %v333 = vadd.f32 0.0, %v332
        %v334 = vpop.f32.mrb[0].mxu0
        %v335 = vadd.f32 0.0, %v334
        %336 = vmatprep.mubr.bf16.mxu0 0
        %337 = vmatmul.mubr.bf16.gmra.mrb[0].mxu0 %v270
        %v338 = vpop.f32.mrb[0].mxu0
        %v339 = vadd.f32 0.0, %v338
        %v340 = vpop.f32.mrb[0].mxu0
        %v341 = vadd.f32 0.0, %v340
        %v342 = vpop.f32.mrb[0].mxu0
        %v343 = vadd.f32 0.0, %v342
        %v344 = vpop.f32.mrb[0].mxu0
        %v345 = vadd.f32 0.0, %v344
        %346 = vmatprep.mubr.bf16.mxu0 0
        %347 = vmatmul.mubr.bf16.gmra.mrb[0].mxu0 %v273
        %v348 = vpop.f32.mrb[0].mxu0
        %v349 = vadd.f32 0.0, %v348
        %v350 = vpop.f32.mrb[0].mxu0
        %v351 = vadd.f32 0.0, %v350
        %v352 = vpop.f32.mrb[0].mxu0
        %v353 = vadd.f32 0.0, %v352
        %v354 = vpop.f32.mrb[0].mxu0
        %v355 = vadd.f32 0.0, %v354
        %356 = vmatprep.mubr.bf16.mxu0 0
        %357 = vmatmul.mubr.bf16.gmra.mrb[0].mxu0 %v276
        %v358 = vpop.f32.mrb[0].mxu0
        %v359 = vadd.f32 0.0, %v358
        %v360 = vpop.f32.mrb[0].mxu0
        %v361 = vadd.f32 0.0, %v360
        %v362 = vpop.f32.mrb[0].mxu0
        %v363 = vadd.f32 0.0, %v362
        %v364 = vpop.f32.mrb[0].mxu0
        %v365 = vadd.f32 0.0, %v364
        %366 = vmatprep.mubr.bf16.mxu0 0
        %367 = vmatmul.mubr.bf16.gmra.mrb[0].mxu0 %v279
        %v368 = vpop.f32.mrb[0].mxu0
        %v369 = vadd.f32 0.0, %v368
        %v370 = vpop.f32.mrb[0].mxu0
        %v371 = vadd.f32 0.0, %v370
        %v372 = vpop.f32.mrb[0].mxu0
        %v373 = vadd.f32 0.0, %v372
        %v374 = vpop.f32.mrb[0].mxu0
        %v375 = vadd.f32 0.0, %v374
        %376 = vmatprep.mubr.bf16.mxu0 0
        %377 = vmatmul.mubr.bf16.gmra.mrb[0].mxu0 %v282
        %v378 = vpop.f32.mrb[0].mxu0
        %v379 = vadd.f32 0.0, %v378
        %v380 = vpop.f32.mrb[0].mxu0
        %v381 = vadd.f32 0.0, %v380
        %v382 = vpop.f32.mrb[0].mxu0
        %v383 = vpop.f32.mrb[0].mxu0
        %384 = vdwg.mxu0
        %v385 = vmul.f32 %v319, 0.5
        %v386 = vmul.f32 %v321, 0.5
        %v387 = vmul.f32 %v323, 0.5
        %v388 = vmul.f32 %v325, 0.5
        %v389 = vmul.f32 %v329, 0.5
        %v390 = vmul.f32 %v331, 0.5
        %v391 = vmul.f32 %v333, 0.5
        %v392 = vmul.f32 %v335, 0.5
        %v393 = vmul.f32 %v339, 0.5
        %v394 = vmul.f32 %v341, 0.5
        %v395 = vmul.f32 %v343, 0.5
        %v396 = vmul.f32 %v345, 0.5
        %v397 = vmul.f32 %v349, 0.5
        %v398 = vmul.f32 %v351, 0.5
        %v399 = vmul.f32 %v353, 0.5
        %v400 = vmul.f32 %v355, 0.5
        %v401 = vmul.f32 %v359, 0.5
        %v402 = vmul.f32 %v361, 0.5
        %v403 = vmul.f32 %v363, 0.5
        %v404 = vmul.f32 %v365, 0.5
        %v405 = vmul.f32 %v369, 0.5
        %v406 = vmul.f32 %v371, 0.5
        %v407 = vmul.f32 %v373, 0.5
        %v408 = vmul.f32 %v375, 0.5
        %v409 = vmul.f32 %v379, 0.5
        %v410 = vmul.f32 %v381, 0.5
        %v411 = vpack.c.bf16 %v387, %v385
        %v412 = vpack.c.bf16 %v388, %v386
        %v413 = vpack.c.bf16 %v391, %v389
        %v414 = vpack.c.bf16 %v392, %v390
        %v415 = vpack.c.bf16 %v395, %v393
        %v416 = vpack.c.bf16 %v396, %v394
        %v417 = vpack.c.bf16 %v399, %v397
        %v418 = vpack.c.bf16 %v400, %v398
        %v419 = vpack.c.bf16 %v403, %v401
        %v420 = vpack.c.bf16 %v404, %v402
        %v421 = vpack.c.bf16 %v407, %v405
        %v422 = vpack.c.bf16 %v408, %v406
        %v423 = vpack.c.bf16 %v409, %v409
        %v424 = vpack.c.bf16 %v410, %v410
        %v425 = vtanh.bf16.pop %v411
        %v426 = vtanh.bf16.pop %v412
        %v427 = vtanh.bf16.pop %v413
        %v428 = vtanh.bf16.pop %v414
        %v429 = vtanh.bf16.pop %v415
        %v430 = vtanh.bf16.pop %v416
        %v431 = vtanh.bf16.pop %v417
        %v432 = vtanh.bf16.pop %v418
        %v433 = vtanh.bf16.pop %v419
        %v434 = vtanh.bf16.pop %v420
        %v435 = vtanh.bf16.pop %v421
        %v436 = vtanh.bf16.pop %v422
        %v437 = vtanh.bf16.pop %v423
        %v438 = vtanh.bf16.pop %v424
        %v439 = vmul.bf16 %v425, 1056980736
        %v440 = vmul.bf16 %v426, 1056980736
        %v441 = vmul.bf16 %v427, 1056980736
        %v442 = vmul.bf16 %v428, 1056980736
        %v443 = vmul.bf16 %v429, 1056980736
        %v444 = vmul.bf16 %v430, 1056980736
        %v445 = vmul.bf16 %v431, 1056980736
        %v446 = vmul.bf16 %v432, 1056980736
        %v447 = vmul.bf16 %v433, 1056980736
        %v448 = vmul.bf16 %v434, 1056980736
        %v449 = vmul.bf16 %v435, 1056980736
        %v450 = vmul.bf16 %v436, 1056980736
        %v451 = vmul.bf16 %v437, 1056980736
        %v452 = vmul.bf16 %v438, 1056980736
        %v453 = vadd.bf16 %v439, 1056980736
        %v454 = vadd.bf16 %v440, 1056980736
        %v455 = vadd.bf16 %v441, 1056980736
        %v456 = vadd.bf16 %v442, 1056980736
        %v457 = vadd.bf16 %v443, 1056980736
        %v458 = vadd.bf16 %v444, 1056980736
        %v459 = vadd.bf16 %v445, 1056980736
        %v460 = vadd.bf16 %v446, 1056980736
        %v461 = vadd.bf16 %v447, 1056980736
        %v462 = vadd.bf16 %v448, 1056980736
        %v463 = vadd.bf16 %v449, 1056980736
        %v464 = vadd.bf16 %v450, 1056980736
        %v465 = vadd.bf16 %v451, 1056980736
        %v466 = vadd.bf16 %v452, 1056980736
        %v481 = vunpack.c.l.b16 %v453
        %v482 = vunpack.c.l.b16 %v454
        %v483 = vunpack.c.h.b16 %v453
        %v484 = vunpack.c.h.b16 %v454
        %v485 = vunpack.c.l.b16 %v455
        %v486 = vunpack.c.l.b16 %v456
        %v487 = vunpack.c.h.b16 %v455
        %v488 = vunpack.c.h.b16 %v456
        %v489 = vunpack.c.l.b16 %v457
        %v490 = vunpack.c.l.b16 %v458
        %v491 = vunpack.c.h.b16 %v457
        %v492 = vunpack.c.h.b16 %v458
        %v493 = vunpack.c.l.b16 %v459
        %v494 = vunpack.c.l.b16 %v460
        %v495 = vunpack.c.h.b16 %v459
        %v496 = vunpack.c.h.b16 %v460
        %v497 = vunpack.c.l.b16 %v461
        %v498 = vunpack.c.l.b16 %v462
        %v499 = vunpack.c.h.b16 %v461
        %v500 = vunpack.c.h.b16 %v462
        %v501 = vunpack.c.l.b16 %v463
        %v502 = vunpack.c.l.b16 %v464
        %v503 = vunpack.c.h.b16 %v463
        %v504 = vunpack.c.h.b16 %v464
        %v505 = vunpack.c.l.b16 %v465
        %v506 = vunpack.c.l.b16 %v466
        %v507 = vpack.c.b16 %v482, %v481
        %v508 = vpack.c.b16 %v484, %v483
        %v509 = vpack.c.b16 %v486, %v485
        %v510 = vpack.c.b16 %v488, %v487
        %v511 = vpack.c.b16 %v490, %v489
        %v512 = vpack.c.b16 %v492, %v491
        %v513 = vpack.c.b16 %v494, %v493
        %v514 = vpack.c.b16 %v496, %v495
        %v515 = vpack.c.b16 %v498, %v497
        %v516 = vpack.c.b16 %v500, %v499
        %v517 = vpack.c.b16 %v502, %v501
        %v518 = vpack.c.b16 %v504, %v503
        %v519 = vpack.c.b16 %v506, %v505
        %533 = vst [vmem:[%s163] sm:$0xff] %v507
        %534 = vst [vmem:[%s163 + $0x8] sm:$0xff] %v508
        %535 = vst [vmem:[%s163 + $0x10] sm:$0xff] %v509
        %536 = vst [vmem:[%s163 + $0x18] sm:$0xff] %v510
        %537 = vst [vmem:[%s163 + $0x20] sm:$0xff] %v511
        %538 = vst [vmem:[%s163 + $0x28] sm:$0xff] %v512
        %539 = vst [vmem:[%s163 + $0x30] sm:$0xff] %v513
        %540 = vst [vmem:[%s163 + $0x38] sm:$0xff] %v514
        %541 = vst [vmem:[%s163 + $0x40] sm:$0xff] %v515
        %542 = vst [vmem:[%s163 + $0x48] sm:$0xff] %v516
        %543 = vst [vmem:[%s163 + $0x50] sm:$0xff] %v517
        %544 = vst [vmem:[%s163 + $0x58] sm:$0xff] %v518
        %545 = vst [vmem:[%s163 + $0x60] sm:$0xff] %v519
        %s546 = sand.u32 %s85, 1
        %s547 = scalar_lea.sflag [#allocation3], %s546
        %s548 = sand.u32 %s85, 1
        %s549 = smul.addr %s548, 104
        %s550 = scalar_lea.vmem [#allocation2], %s549
        // Predicated region
        $region29: #{tpu_custom_call.1} parent=27 // pred_check
          %p551 = pneg %p95
        $region30: #{tpu_custom_call.1} parent=27 // pred_check_branch
          %553 = sbr.rel (%p551) target = $region32
        $region31: #{tpu_custom_call.1} parent=27 // pred_region
          %s554 = smul.u32 13, %s20
          %s555 = smul.u32 2, %s21
          %s556 = ssub.s32 25, %s554
          %p557 = scmp.lt.s32.totalorder %s556, 13
          %s558 = scalar_select %p557, %s556, 13
          %s559 = smul.u32 64, %s558
          %s560 = smul.u32 %s559, 2
          %s562 = ssub.s32 1664, %s560
          %563 = vsyncadd %s547, %s562
          %p564 = scmp.ne.s32.totalorder 0, %s560
          %s565 = smul.addr %s554, 2
          %s566 = sadd.s32 %s555, %s565
          %s567 = smul.addr %s566, 64
          %s568 = scalar_lea.hbm %s2, %s567
          %s569 = smul.u32 8, %s558
          %s570 = sshll.u32 %s550, 4
          %s571 = int_to_ptr.vmem [resolvable:$true] %s570
          %s572 = sshll.u32 %s569, 4
          %576 = dma.vmem_to_hbm [thread:$0]  (%p564), %s571, %s572, %s568, %s547, 128, 128, 8
        $region32: #{tpu_custom_call.1} parent=27 // pred_fallthru
          _
      $region28: #{tpu_custom_call.1} parent=5 // pred_fallthru
        _
      %p577 = scmp.le.s32.totalorder 2, %s11
      // Predicated region
      $region33: #{tpu_custom_call.1} parent=5 // pred_check
        %p578 = pneg %p577
      $region34: #{tpu_custom_call.1} parent=5 // pred_check_branch
        %580 = sbr.rel (%p578) target = $region36
      $region35: #{tpu_custom_call.1} parent=5 // pred_region
        %s581 = ssub.s32 %s11, 2
        // Predicated region
        $region37: #{tpu_custom_call.1} parent=35 // pred_check
          %p582 = pneg %p101
        $region38: #{tpu_custom_call.1} parent=35 // pred_check_branch
          %584 = sbr.rel (%p582) target = $region40
        $region39: #{tpu_custom_call.1} parent=35 // pred_region
          %s585 = sand.u32 %s86, 1
          %s586 = scalar_lea.sflag [#allocation3], %s585
          %s587 = sand.u32 %s86, 1
          %s588 = smul.addr %s587, 104
          %s589 = scalar_lea.vmem [#allocation2], %s588
          %590 = dma.done %s586, 1664
        $region40: #{tpu_custom_call.1} parent=35 // pred_fallthru
          _
      $region36: #{tpu_custom_call.1} parent=5 // pred_fallthru
        _
    $region6: #{tpu_custom_call.1} parent=1 // loop_footer
      %s15 = sadd.s32 1, %s11
    $region7: #{tpu_custom_call.1} parent=1 // loop_footer_branch
      %10 = sbr.rel target = $region3
    $region8: #{tpu_custom_call.1} parent=1 // loop_exit
      _
    %591 = vsyncpa [#allocation3], 1
    %s592 = scalar_lea.sflag [#allocation3], 1
    %593 = vsyncpa %s592, 1

</llo_original>
